<compile_context>
chip_gen: v5e
topology: v5e:2x2
jax: 0.10.0
libtpu: 0.0.40
codegen_flags: <defaults>
</compile_context>

<pallas_src>
import functools

import jax
import jax.numpy as jnp
import numpy as np
from jax import lax
from jax.experimental import pallas as pl
from jax.experimental.pallas import tpu as pltpu


def _attn_kernel(x_ref, wqkv_ref, wproj_ref, bias_ref, o_ref, oacc_ref,
                 *, num_heads, head_dim):
    C = num_heads * head_dim
    cdt = x_ref.dtype                      # matmul compute dtype (bf16 by default)

    x = x_ref[0]                           # (N, C), compute dtype

    # Fused QKV projection: one lane-dense matmul per batch element.
    # The 1/sqrt(head_dim) scale is already folded into the q columns.
    qkv_f32 = jnp.dot(x, wqkv_ref[...],
                      preferred_element_type=jnp.float32)    # (N, 3C) f32
    qkv = qkv_f32.astype(cdt)              # single cast; slices below reuse it

    # Unrolled per-head attention over static Dh column slices.
    for h in range(num_heads):
        lo, hi = h * head_dim, (h + 1) * head_dim
        q = qkv[:, 0 * C + lo:0 * C + hi]                     # (N, Dh)
        k = qkv[:, 1 * C + lo:1 * C + hi]                     # (N, Dh)
        v = qkv[:, 2 * C + lo:2 * C + hi]                     # (N, Dh)

        # Scores: contract over head_dim directly (no k transpose via XLU).
        s = lax.dot_general(q, k,
                            dimension_numbers=(((1,), (1,)), ((), ())),
                            preferred_element_type=jnp.float32)   # (N, N) f32

        # Numerically stable softmax, kept in f32.
        s = s - jnp.max(s, axis=-1, keepdims=True)
        p = jnp.exp(s)
        denom = jnp.sum(p, axis=-1, keepdims=True)                # (N, 1) f32

        # Unnormalized p @ v on the MXU, then normalize with the (cheap) EUP
        # approximate reciprocal — fewer VPU multiplies than scaling p itself.
        o_h = jnp.dot(p.astype(cdt), v,
                      preferred_element_type=jnp.float32)         # (N, Dh) f32
        o_h = o_h * pl.reciprocal(denom, approx=True)

        # Concatenate heads by writing this head's column slice of the scratch.
        oacc_ref[:, lo:hi] = o_h

    # Single output projection for all heads + bias (f32 accumulation).
    y = jnp.dot(oacc_ref[...].astype(cdt), wproj_ref[...],
                preferred_element_type=jnp.float32)               # (N, C) f32
    o_ref[0] = (y + bias_ref[...]).astype(o_ref.dtype)


def attention_forward(x, w_qkv, w_proj, b_proj, num_heads,
                      compute_dtype=jnp.bfloat16):
    """x: (B, N, C); w_qkv: (C, 3C) (input-major, i.e. torch weight.T);
    w_proj: (C, C) (input-major); b_proj: (C,)."""
    B, N, C = x.shape
    H = num_heads
    assert C % H == 0, "dim should be divisible by num_heads"
    Dh = C // H
    scale = Dh ** -0.5

    # Fold the softmax scale into the q columns of the fused QKV weight.
    w_qkv_scaled = jnp.concatenate([w_qkv[:, :C] * scale, w_qkv[:, C:]], axis=1)

    # Cast MXU operands to the compute dtype (bf16 by default); keep the bias
    # in f32 (it is added after the f32-accumulated projection).
    xc = x.astype(compute_dtype)
    wqkv_c = w_qkv_scaled.astype(compute_dtype)
    wproj_c = w_proj.astype(compute_dtype)
    bias = b_proj.reshape(1, C).astype(jnp.float32)

    kernel = functools.partial(_attn_kernel, num_heads=H, head_dim=Dh)

    return pl.pallas_call(
        kernel,
        out_shape=jax.ShapeDtypeStruct((B, N, C), x.dtype),
        grid_spec=pltpu.PrefetchScalarGridSpec(
            num_scalar_prefetch=0,
            grid=(B,),
            in_specs=[
                pl.BlockSpec((1, N, C), lambda b: (b, 0, 0)),       # x
                pl.BlockSpec((C, 3 * C), lambda b: (0, 0)),         # w_qkv (resident)
                pl.BlockSpec((C, C), lambda b: (0, 0)),             # w_proj (resident)
                pl.BlockSpec((1, C), lambda b: (0, 0)),             # bias (resident)
            ],
            out_specs=pl.BlockSpec((1, N, C), lambda b: (b, 0, 0)),
            scratch_shapes=[pltpu.VMEM((N, C), jnp.float32)],       # head-concat buffer
        ),
        compiler_params=pltpu.CompilerParams(
            dimension_semantics=("parallel",)),
    )(xc, wqkv_c, wproj_c, bias)


def attention_reference(x, w_qkv, w_proj, b_proj, num_heads):
    """Plain-JAX (f32) reimplementation of the PyTorch forward, for verification."""
    B, N, C = x.shape
    H = num_heads
    Dh = C // H
    scale = Dh ** -0.5
    qkv = (x @ w_qkv).reshape(B, N, 3, H, Dh).transpose(2, 0, 3, 1, 4)
    q, k, v = qkv[0], qkv[1], qkv[2]
    q = q * scale
    attn = jax.nn.softmax(q @ jnp.swapaxes(k, -2, -1), axis=-1)
    o = (attn @ v).transpose(0, 2, 1, 3).reshape(B, N, C)
    return o @ w_proj + b_proj


if __name__ == "__main__":
    B, N, C, H = 2, 8, 32, 8   # dim=32, num_heads=8 -> head_dim=4

    key = jax.random.PRNGKey(0)
    kx, kqkv, kp, kb = jax.random.split(key, 4)

    x = jax.random.normal(kx, (B, N, C), dtype=jnp.float32)
    # Deterministic parameter init (synthetic; not a checkpoint load).
    w_qkv = jax.random.normal(kqkv, (C, 3 * C), dtype=jnp.float32) * 0.05
    w_proj = jax.random.normal(kp, (C, C), dtype=jnp.float32) * 0.05
    b_proj = jax.random.normal(kb, (C,), dtype=jnp.float32) * 0.01

    out = attention_forward(x, w_qkv, w_proj, b_proj, num_heads=H)
    out = jax.block_until_ready(out)

    ref = attention_reference(x, w_qkv, w_proj, b_proj, num_heads=H)
    # Tolerance accounts for bf16 MXU operands (softmax / accumulation in f32).
    np.testing.assert_allclose(np.asarray(out), np.asarray(ref),
                               rtol=5e-2, atol=1e-2)

    print("KERNEL_OK")
</pallas_src>

<mosaic_0001>
module attributes {stable_mosaic.version = 11 : i64} {
  func.func @_attn_kernel(%arg0: i32, %arg1: memref<1x8x32xbf16, #tpu.memory_space<vmem>>, %arg2: memref<32x96xbf16, #tpu.memory_space<vmem>>, %arg3: memref<32x32xbf16, #tpu.memory_space<vmem>>, %arg4: memref<1x32xf32, #tpu.memory_space<vmem>>, %arg5: memref<1x8x32xf32, #tpu.memory_space<vmem>>, %arg6: memref<8x32xf32, #tpu.memory_space<vmem>>) attributes {dimension_semantics = [#tpu.dimension_semantics<parallel>], iteration_bounds = array<i64: 2>, scalar_prefetch = 0 : i64, scratch_operands = 1 : i64, tpu.core_type = #tpu.core_type<tc>, window_params = [{transform_indices = @transform_0, window_bounds = array<i64: 1, 8, 32>}, {pipeline_mode = #tpu.pipeline_mode<synchronous>, transform_indices = @transform_1, window_bounds = array<i64: 32, 96>}, {pipeline_mode = #tpu.pipeline_mode<synchronous>, transform_indices = @transform_2, window_bounds = array<i64: 32, 32>}, {pipeline_mode = #tpu.pipeline_mode<synchronous>, transform_indices = @transform_3, window_bounds = array<i64: 1, 32>}, {transform_indices = @transform_4, window_bounds = array<i64: 1, 8, 32>}]} {
    %c0 = arith.constant 0 : index
    %c0_0 = arith.constant 0 : index
    %c0_1 = arith.constant 0 : index
    %0 = vector.load %arg1[%c0, %c0_0, %c0_1] : memref<1x8x32xbf16, #tpu.memory_space<vmem>>, vector<1x8x32xbf16>
    %1 = vector.shape_cast %0 : vector<1x8x32xbf16> to vector<8x32xbf16>
    %c0_2 = arith.constant 0 : index
    %c0_3 = arith.constant 0 : index
    %2 = vector.load %arg2[%c0_2, %c0_3] : memref<32x96xbf16, #tpu.memory_space<vmem>>, vector<32x96xbf16>
    %cst = arith.constant dense<0.000000e+00> : vector<8x96xf32>
    %3 = tpu.matmul %1, %2, %cst {dimension_numbers = #tpu.dot_dimension_numbers<[1], [0], [0], [1], [0, 0, 1, 1], [], []>} : vector<8x32xbf16>, vector<32x96xbf16>, vector<8x96xf32> -> vector<8x96xf32>
    %4 = arith.truncf %3 : vector<8x96xf32> to vector<8x96xbf16>
    %5 = vector.extract_strided_slice %4 {offsets = [0, 0], sizes = [8, 4], strides = [1, 1]} : vector<8x96xbf16> to vector<8x4xbf16>
    %6 = vector.extract_strided_slice %4 {offsets = [0, 32], sizes = [8, 4], strides = [1, 1]} : vector<8x96xbf16> to vector<8x4xbf16>
    %7 = vector.extract_strided_slice %4 {offsets = [0, 64], sizes = [8, 4], strides = [1, 1]} : vector<8x96xbf16> to vector<8x4xbf16>
    %cst_4 = arith.constant dense<0.000000e+00> : vector<8x8xf32>
    %8 = tpu.matmul %5, %6, %cst_4 {dimension_numbers = #tpu.dot_dimension_numbers<[1], [1], [0], [0], [0, 0, 1, 0], [], []>} : vector<8x4xbf16>, vector<8x4xbf16>, vector<8x8xf32> -> vector<8x8xf32>
    %cst_5 = arith.constant dense<0xFF800000> : vector<8xf32>
    %9 = vector.multi_reduction <maximumf>, %8, %cst_5 [1] : vector<8x8xf32> to vector<8xf32>
    %10 = vector.shape_cast %9 : vector<8xf32> to vector<8x1xf32>
    %11 = vector.broadcast %10 : vector<8x1xf32> to vector<8x8xf32>
    %12 = arith.subf %8, %11 : vector<8x8xf32>
    %13 = math.exp %12 : vector<8x8xf32>
    %cst_6 = arith.constant dense<0.000000e+00> : vector<8xf32>
    %14 = vector.multi_reduction <add>, %13, %cst_6 [1] : vector<8x8xf32> to vector<8xf32>
    %15 = vector.shape_cast %14 : vector<8xf32> to vector<8x1xf32>
    %16 = arith.truncf %13 : vector<8x8xf32> to vector<8x8xbf16>
    %cst_7 = arith.constant dense<0.000000e+00> : vector<8x4xf32>
    %17 = tpu.matmul %16, %7, %cst_7 {dimension_numbers = #tpu.dot_dimension_numbers<[1], [0], [0], [1], [0, 0, 1, 1], [], []>} : vector<8x8xbf16>, vector<8x4xbf16>, vector<8x4xf32> -> vector<8x4xf32>
    %18 = tpu.reciprocal %15 {approx = true} : vector<8x1xf32> -> vector<8x1xf32>
    %19 = vector.broadcast %18 : vector<8x1xf32> to vector<8x4xf32>
    %20 = arith.mulf %17, %19 : vector<8x4xf32>
    %c0_8 = arith.constant 0 : index
    %c0_9 = arith.constant 0 : index
    %21 = vector.load %arg6[%c0_8, %c0_9] : memref<8x32xf32, #tpu.memory_space<vmem>>, vector<8x4xf32>
    tpu.vector_store %arg6[%c0_8, %c0_9], %20 {strides = array<i32>} : memref<8x32xf32, #tpu.memory_space<vmem>>, vector<8x4xf32>,
    %22 = vector.extract_strided_slice %4 {offsets = [0, 4], sizes = [8, 4], strides = [1, 1]} : vector<8x96xbf16> to vector<8x4xbf16>
    %23 = vector.extract_strided_slice %4 {offsets = [0, 36], sizes = [8, 4], strides = [1, 1]} : vector<8x96xbf16> to vector<8x4xbf16>
    %24 = vector.extract_strided_slice %4 {offsets = [0, 68], sizes = [8, 4], strides = [1, 1]} : vector<8x96xbf16> to vector<8x4xbf16>
    %cst_10 = arith.constant dense<0.000000e+00> : vector<8x8xf32>
    %25 = tpu.matmul %22, %23, %cst_10 {dimension_numbers = #tpu.dot_dimension_numbers<[1], [1], [0], [0], [0, 0, 1, 0], [], []>} : vector<8x4xbf16>, vector<8x4xbf16>, vector<8x8xf32> -> vector<8x8xf32>
    %cst_11 = arith.constant dense<0xFF800000> : vector<8xf32>
    %26 = vector.multi_reduction <maximumf>, %25, %cst_11 [1] : vector<8x8xf32> to vector<8xf32>
    %27 = vector.shape_cast %26 : vector<8xf32> to vector<8x1xf32>
    %28 = vector.broadcast %27 : vector<8x1xf32> to vector<8x8xf32>
    %29 = arith.subf %25, %28 : vector<8x8xf32>
    %30 = math.exp %29 : vector<8x8xf32>
    %cst_12 = arith.constant dense<0.000000e+00> : vector<8xf32>
    %31 = vector.multi_reduction <add>, %30, %cst_12 [1] : vector<8x8xf32> to vector<8xf32>
    %32 = vector.shape_cast %31 : vector<8xf32> to vector<8x1xf32>
    %33 = arith.truncf %30 : vector<8x8xf32> to vector<8x8xbf16>
    %cst_13 = arith.constant dense<0.000000e+00> : vector<8x4xf32>
    %34 = tpu.matmul %33, %24, %cst_13 {dimension_numbers = #tpu.dot_dimension_numbers<[1], [0], [0], [1], [0, 0, 1, 1], [], []>} : vector<8x8xbf16>, vector<8x4xbf16>, vector<8x4xf32> -> vector<8x4xf32>
    %35 = tpu.reciprocal %32 {approx = true} : vector<8x1xf32> -> vector<8x1xf32>
    %36 = vector.broadcast %35 : vector<8x1xf32> to vector<8x4xf32>
    %37 = arith.mulf %34, %36 : vector<8x4xf32>
    %c0_14 = arith.constant 0 : index
    %c4 = arith.constant 4 : index
    %38 = vector.load %arg6[%c0_14, %c4] : memref<8x32xf32, #tpu.memory_space<vmem>>, vector<8x4xf32>
    tpu.vector_store %arg6[%c0_14, %c4], %37 {strides = array<i32>} : memref<8x32xf32, #tpu.memory_space<vmem>>, vector<8x4xf32>,
    %39 = vector.extract_strided_slice %4 {offsets = [0, 8], sizes = [8, 4], strides = [1, 1]} : vector<8x96xbf16> to vector<8x4xbf16>
    %40 = vector.extract_strided_slice %4 {offsets = [0, 40], sizes = [8, 4], strides = [1, 1]} : vector<8x96xbf16> to vector<8x4xbf16>
    %41 = vector.extract_strided_slice %4 {offsets = [0, 72], sizes = [8, 4], strides = [1, 1]} : vector<8x96xbf16> to vector<8x4xbf16>
    %cst_15 = arith.constant dense<0.000000e+00> : vector<8x8xf32>
    %42 = tpu.matmul %39, %40, %cst_15 {dimension_numbers = #tpu.dot_dimension_numbers<[1], [1], [0], [0], [0, 0, 1, 0], [], []>} : vector<8x4xbf16>, vector<8x4xbf16>, vector<8x8xf32> -> vector<8x8xf32>
    %cst_16 = arith.constant dense<0xFF800000> : vector<8xf32>
    %43 = vector.multi_reduction <maximumf>, %42, %cst_16 [1] : vector<8x8xf32> to vector<8xf32>
    %44 = vector.shape_cast %43 : vector<8xf32> to vector<8x1xf32>
    %45 = vector.broadcast %44 : vector<8x1xf32> to vector<8x8xf32>
    %46 = arith.subf %42, %45 : vector<8x8xf32>
    %47 = math.exp %46 : vector<8x8xf32>
    %cst_17 = arith.constant dense<0.000000e+00> : vector<8xf32>
    %48 = vector.multi_reduction <add>, %47, %cst_17 [1] : vector<8x8xf32> to vector<8xf32>
    %49 = vector.shape_cast %48 : vector<8xf32> to vector<8x1xf32>
    %50 = arith.truncf %47 : vector<8x8xf32> to vector<8x8xbf16>
    %cst_18 = arith.constant dense<0.000000e+00> : vector<8x4xf32>
    %51 = tpu.matmul %50, %41, %cst_18 {dimension_numbers = #tpu.dot_dimension_numbers<[1], [0], [0], [1], [0, 0, 1, 1], [], []>} : vector<8x8xbf16>, vector<8x4xbf16>, vector<8x4xf32> -> vector<8x4xf32>
    %52 = tpu.reciprocal %49 {approx = true} : vector<8x1xf32> -> vector<8x1xf32>
    %53 = vector.broadcast %52 : vector<8x1xf32> to vector<8x4xf32>
    %54 = arith.mulf %51, %53 : vector<8x4xf32>
    %c0_19 = arith.constant 0 : index
    %c8 = arith.constant 8 : index
    %55 = vector.load %arg6[%c0_19, %c8] : memref<8x32xf32, #tpu.memory_space<vmem>>, vector<8x4xf32>
    tpu.vector_store %arg6[%c0_19, %c8], %54 {strides = array<i32>} : memref<8x32xf32, #tpu.memory_space<vmem>>, vector<8x4xf32>,
    %56 = vector.extract_strided_slice %4 {offsets = [0, 12], sizes = [8, 4], strides = [1, 1]} : vector<8x96xbf16> to vector<8x4xbf16>
    %57 = vector.extract_strided_slice %4 {offsets = [0, 44], sizes = [8, 4], strides = [1, 1]} : vector<8x96xbf16> to vector<8x4xbf16>
    %58 = vector.extract_strided_slice %4 {offsets = [0, 76], sizes = [8, 4], strides = [1, 1]} : vector<8x96xbf16> to vector<8x4xbf16>
    %cst_20 = arith.constant dense<0.000000e+00> : vector<8x8xf32>
    %59 = tpu.matmul %56, %57, %cst_20 {dimension_numbers = #tpu.dot_dimension_numbers<[1], [1], [0], [0], [0, 0, 1, 0], [], []>} : vector<8x4xbf16>, vector<8x4xbf16>, vector<8x8xf32> -> vector<8x8xf32>
    %cst_21 = arith.constant dense<0xFF800000> : vector<8xf32>
    %60 = vector.multi_reduction <maximumf>, %59, %cst_21 [1] : vector<8x8xf32> to vector<8xf32>
    %61 = vector.shape_cast %60 : vector<8xf32> to vector<8x1xf32>
    %62 = vector.broadcast %61 : vector<8x1xf32> to vector<8x8xf32>
    %63 = arith.subf %59, %62 : vector<8x8xf32>
    %64 = math.exp %63 : vector<8x8xf32>
    %cst_22 = arith.constant dense<0.000000e+00> : vector<8xf32>
    %65 = vector.multi_reduction <add>, %64, %cst_22 [1] : vector<8x8xf32> to vector<8xf32>
    %66 = vector.shape_cast %65 : vector<8xf32> to vector<8x1xf32>
    %67 = arith.truncf %64 : vector<8x8xf32> to vector<8x8xbf16>
    %cst_23 = arith.constant dense<0.000000e+00> : vector<8x4xf32>
    %68 = tpu.matmul %67, %58, %cst_23 {dimension_numbers = #tpu.dot_dimension_numbers<[1], [0], [0], [1], [0, 0, 1, 1], [], []>} : vector<8x8xbf16>, vector<8x4xbf16>, vector<8x4xf32> -> vector<8x4xf32>
    %69 = tpu.reciprocal %66 {approx = true} : vector<8x1xf32> -> vector<8x1xf32>
    %70 = vector.broadcast %69 : vector<8x1xf32> to vector<8x4xf32>
    %71 = arith.mulf %68, %70 : vector<8x4xf32>
    %c0_24 = arith.constant 0 : index
    %c12 = arith.constant 12 : index
    %72 = vector.load %arg6[%c0_24, %c12] : memref<8x32xf32, #tpu.memory_space<vmem>>, vector<8x4xf32>
    tpu.vector_store %arg6[%c0_24, %c12], %71 {strides = array<i32>} : memref<8x32xf32, #tpu.memory_space<vmem>>, vector<8x4xf32>,
    %73 = vector.extract_strided_slice %4 {offsets = [0, 16], sizes = [8, 4], strides = [1, 1]} : vector<8x96xbf16> to vector<8x4xbf16>
    %74 = vector.extract_strided_slice %4 {offsets = [0, 48], sizes = [8, 4], strides = [1, 1]} : vector<8x96xbf16> to vector<8x4xbf16>
    %75 = vector.extract_strided_slice %4 {offsets = [0, 80], sizes = [8, 4], strides = [1, 1]} : vector<8x96xbf16> to vector<8x4xbf16>
    %cst_25 = arith.constant dense<0.000000e+00> : vector<8x8xf32>
    %76 = tpu.matmul %73, %74, %cst_25 {dimension_numbers = #tpu.dot_dimension_numbers<[1], [1], [0], [0], [0, 0, 1, 0], [], []>} : vector<8x4xbf16>, vector<8x4xbf16>, vector<8x8xf32> -> vector<8x8xf32>
    %cst_26 = arith.constant dense<0xFF800000> : vector<8xf32>
    %77 = vector.multi_reduction <maximumf>, %76, %cst_26 [1] : vector<8x8xf32> to vector<8xf32>
    %78 = vector.shape_cast %77 : vector<8xf32> to vector<8x1xf32>
    %79 = vector.broadcast %78 : vector<8x1xf32> to vector<8x8xf32>
    %80 = arith.subf %76, %79 : vector<8x8xf32>
    %81 = math.exp %80 : vector<8x8xf32>
    %cst_27 = arith.constant dense<0.000000e+00> : vector<8xf32>
    %82 = vector.multi_reduction <add>, %81, %cst_27 [1] : vector<8x8xf32> to vector<8xf32>
    %83 = vector.shape_cast %82 : vector<8xf32> to vector<8x1xf32>
    %84 = arith.truncf %81 : vector<8x8xf32> to vector<8x8xbf16>
    %cst_28 = arith.constant dense<0.000000e+00> : vector<8x4xf32>
    %85 = tpu.matmul %84, %75, %cst_28 {dimension_numbers = #tpu.dot_dimension_numbers<[1], [0], [0], [1], [0, 0, 1, 1], [], []>} : vector<8x8xbf16>, vector<8x4xbf16>, vector<8x4xf32> -> vector<8x4xf32>
    %86 = tpu.reciprocal %83 {approx = true} : vector<8x1xf32> -> vector<8x1xf32>
    %87 = vector.broadcast %86 : vector<8x1xf32> to vector<8x4xf32>
    %88 = arith.mulf %85, %87 : vector<8x4xf32>
    %c0_29 = arith.constant 0 : index
    %c16 = arith.constant 16 : index
    %89 = vector.load %arg6[%c0_29, %c16] : memref<8x32xf32, #tpu.memory_space<vmem>>, vector<8x4xf32>
    tpu.vector_store %arg6[%c0_29, %c16], %88 {strides = array<i32>} : memref<8x32xf32, #tpu.memory_space<vmem>>, vector<8x4xf32>,
    %90 = vector.extract_strided_slice %4 {offsets = [0, 20], sizes = [8, 4], strides = [1, 1]} : vector<8x96xbf16> to vector<8x4xbf16>
    %91 = vector.extract_strided_slice %4 {offsets = [0, 52], sizes = [8, 4], strides = [1, 1]} : vector<8x96xbf16> to vector<8x4xbf16>
    %92 = vector.extract_strided_slice %4 {offsets = [0, 84], sizes = [8, 4], strides = [1, 1]} : vector<8x96xbf16> to vector<8x4xbf16>
    %cst_30 = arith.constant dense<0.000000e+00> : vector<8x8xf32>
    %93 = tpu.matmul %90, %91, %cst_30 {dimension_numbers = #tpu.dot_dimension_numbers<[1], [1], [0], [0], [0, 0, 1, 0], [], []>} : vector<8x4xbf16>, vector<8x4xbf16>, vector<8x8xf32> -> vector<8x8xf32>
    %cst_31 = arith.constant dense<0xFF800000> : vector<8xf32>
    %94 = vector.multi_reduction <maximumf>, %93, %cst_31 [1] : vector<8x8xf32> to vector<8xf32>
    %95 = vector.shape_cast %94 : vector<8xf32> to vector<8x1xf32>
    %96 = vector.broadcast %95 : vector<8x1xf32> to vector<8x8xf32>
    %97 = arith.subf %93, %96 : vector<8x8xf32>
    %98 = math.exp %97 : vector<8x8xf32>
    %cst_32 = arith.constant dense<0.000000e+00> : vector<8xf32>
    %99 = vector.multi_reduction <add>, %98, %cst_32 [1] : vector<8x8xf32> to vector<8xf32>
    %100 = vector.shape_cast %99 : vector<8xf32> to vector<8x1xf32>
    %101 = arith.truncf %98 : vector<8x8xf32> to vector<8x8xbf16>
    %cst_33 = arith.constant dense<0.000000e+00> : vector<8x4xf32>
    %102 = tpu.matmul %101, %92, %cst_33 {dimension_numbers = #tpu.dot_dimension_numbers<[1], [0], [0], [1], [0, 0, 1, 1], [], []>} : vector<8x8xbf16>, vector<8x4xbf16>, vector<8x4xf32> -> vector<8x4xf32>
    %103 = tpu.reciprocal %100 {approx = true} : vector<8x1xf32> -> vector<8x1xf32>
    %104 = vector.broadcast %103 : vector<8x1xf32> to vector<8x4xf32>
    %105 = arith.mulf %102, %104 : vector<8x4xf32>
    %c0_34 = arith.constant 0 : index
    %c20 = arith.constant 20 : index
    %106 = vector.load %arg6[%c0_34, %c20] : memref<8x32xf32, #tpu.memory_space<vmem>>, vector<8x4xf32>
    tpu.vector_store %arg6[%c0_34, %c20], %105 {strides = array<i32>} : memref<8x32xf32, #tpu.memory_space<vmem>>, vector<8x4xf32>,
    %107 = vector.extract_strided_slice %4 {offsets = [0, 24], sizes = [8, 4], strides = [1, 1]} : vector<8x96xbf16> to vector<8x4xbf16>
    %108 = vector.extract_strided_slice %4 {offsets = [0, 56], sizes = [8, 4], strides = [1, 1]} : vector<8x96xbf16> to vector<8x4xbf16>
    %109 = vector.extract_strided_slice %4 {offsets = [0, 88], sizes = [8, 4], strides = [1, 1]} : vector<8x96xbf16> to vector<8x4xbf16>
    %cst_35 = arith.constant dense<0.000000e+00> : vector<8x8xf32>
    %110 = tpu.matmul %107, %108, %cst_35 {dimension_numbers = #tpu.dot_dimension_numbers<[1], [1], [0], [0], [0, 0, 1, 0], [], []>} : vector<8x4xbf16>, vector<8x4xbf16>, vector<8x8xf32> -> vector<8x8xf32>
    %cst_36 = arith.constant dense<0xFF800000> : vector<8xf32>
    %111 = vector.multi_reduction <maximumf>, %110, %cst_36 [1] : vector<8x8xf32> to vector<8xf32>
    %112 = vector.shape_cast %111 : vector<8xf32> to vector<8x1xf32>
    %113 = vector.broadcast %112 : vector<8x1xf32> to vector<8x8xf32>
    %114 = arith.subf %110, %113 : vector<8x8xf32>
    %115 = math.exp %114 : vector<8x8xf32>
    %cst_37 = arith.constant dense<0.000000e+00> : vector<8xf32>
    %116 = vector.multi_reduction <add>, %115, %cst_37 [1] : vector<8x8xf32> to vector<8xf32>
    %117 = vector.shape_cast %116 : vector<8xf32> to vector<8x1xf32>
    %118 = arith.truncf %115 : vector<8x8xf32> to vector<8x8xbf16>
    %cst_38 = arith.constant dense<0.000000e+00> : vector<8x4xf32>
    %119 = tpu.matmul %118, %109, %cst_38 {dimension_numbers = #tpu.dot_dimension_numbers<[1], [0], [0], [1], [0, 0, 1, 1], [], []>} : vector<8x8xbf16>, vector<8x4xbf16>, vector<8x4xf32> -> vector<8x4xf32>
    %120 = tpu.reciprocal %117 {approx = true} : vector<8x1xf32> -> vector<8x1xf32>
    %121 = vector.broadcast %120 : vector<8x1xf32> to vector<8x4xf32>
    %122 = arith.mulf %119, %121 : vector<8x4xf32>
    %c0_39 = arith.constant 0 : index
    %c24 = arith.constant 24 : index
    %123 = vector.load %arg6[%c0_39, %c24] : memref<8x32xf32, #tpu.memory_space<vmem>>, vector<8x4xf32>
    tpu.vector_store %arg6[%c0_39, %c24], %122 {strides = array<i32>} : memref<8x32xf32, #tpu.memory_space<vmem>>, vector<8x4xf32>,
    %124 = vector.extract_strided_slice %4 {offsets = [0, 28], sizes = [8, 4], strides = [1, 1]} : vector<8x96xbf16> to vector<8x4xbf16>
    %125 = vector.extract_strided_slice %4 {offsets = [0, 60], sizes = [8, 4], strides = [1, 1]} : vector<8x96xbf16> to vector<8x4xbf16>
    %126 = vector.extract_strided_slice %4 {offsets = [0, 92], sizes = [8, 4], strides = [1, 1]} : vector<8x96xbf16> to vector<8x4xbf16>
    %cst_40 = arith.constant dense<0.000000e+00> : vector<8x8xf32>
    %127 = tpu.matmul %124, %125, %cst_40 {dimension_numbers = #tpu.dot_dimension_numbers<[1], [1], [0], [0], [0, 0, 1, 0], [], []>} : vector<8x4xbf16>, vector<8x4xbf16>, vector<8x8xf32> -> vector<8x8xf32>
    %cst_41 = arith.constant dense<0xFF800000> : vector<8xf32>
    %128 = vector.multi_reduction <maximumf>, %127, %cst_41 [1] : vector<8x8xf32> to vector<8xf32>
    %129 = vector.shape_cast %128 : vector<8xf32> to vector<8x1xf32>
    %130 = vector.broadcast %129 : vector<8x1xf32> to vector<8x8xf32>
    %131 = arith.subf %127, %130 : vector<8x8xf32>
    %132 = math.exp %131 : vector<8x8xf32>
    %cst_42 = arith.constant dense<0.000000e+00> : vector<8xf32>
    %133 = vector.multi_reduction <add>, %132, %cst_42 [1] : vector<8x8xf32> to vector<8xf32>
    %134 = vector.shape_cast %133 : vector<8xf32> to vector<8x1xf32>
    %135 = arith.truncf %132 : vector<8x8xf32> to vector<8x8xbf16>
    %cst_43 = arith.constant dense<0.000000e+00> : vector<8x4xf32>
    %136 = tpu.matmul %135, %126, %cst_43 {dimension_numbers = #tpu.dot_dimension_numbers<[1], [0], [0], [1], [0, 0, 1, 1], [], []>} : vector<8x8xbf16>, vector<8x4xbf16>, vector<8x4xf32> -> vector<8x4xf32>
    %137 = tpu.reciprocal %134 {approx = true} : vector<8x1xf32> -> vector<8x1xf32>
    %138 = vector.broadcast %137 : vector<8x1xf32> to vector<8x4xf32>
    %139 = arith.mulf %136, %138 : vector<8x4xf32>
    %c0_44 = arith.constant 0 : index
    %c28 = arith.constant 28 : index
    %140 = vector.load %arg6[%c0_44, %c28] : memref<8x32xf32, #tpu.memory_space<vmem>>, vector<8x4xf32>
    tpu.vector_store %arg6[%c0_44, %c28], %139 {strides = array<i32>} : memref<8x32xf32, #tpu.memory_space<vmem>>, vector<8x4xf32>,
    %c0_45 = arith.constant 0 : index
    %c0_46 = arith.constant 0 : index
    %141 = vector.load %arg6[%c0_45, %c0_46] : memref<8x32xf32, #tpu.memory_space<vmem>>, vector<8x32xf32>
    %142 = arith.truncf %141 : vector<8x32xf32> to vector<8x32xbf16>
    %c0_47 = arith.constant 0 : index
    %c0_48 = arith.constant 0 : index
    %143 = vector.load %arg3[%c0_47, %c0_48] : memref<32x32xbf16, #tpu.memory_space<vmem>>, vector<32x32xbf16>
    %cst_49 = arith.constant dense<0.000000e+00> : vector<8x32xf32>
    %144 = tpu.matmul %142, %143, %cst_49 {dimension_numbers = #tpu.dot_dimension_numbers<[1], [0], [0], [1], [0, 0, 1, 1], [], []>} : vector<8x32xbf16>, vector<32x32xbf16>, vector<8x32xf32> -> vector<8x32xf32>
    %c0_50 = arith.constant 0 : index
    %c0_51 = arith.constant 0 : index
    %145 = vector.load %arg4[%c0_50, %c0_51] : memref<1x32xf32, #tpu.memory_space<vmem>>, vector<1x32xf32>
    %146 = vector.broadcast %145 : vector<1x32xf32> to vector<8x32xf32>
    %147 = arith.addf %144, %146 : vector<8x32xf32>
    %c0_52 = arith.constant 0 : index
    %c0_53 = arith.constant 0 : index
    %c0_54 = arith.constant 0 : index
    %148 = vector.load %arg5[%c0_52, %c0_53, %c0_54] : memref<1x8x32xf32, #tpu.memory_space<vmem>>, vector<1x8x32xf32>
    %149 = vector.shape_cast %148 : vector<1x8x32xf32> to vector<8x32xf32>
    %150 = vector.shape_cast %147 : vector<8x32xf32> to vector<1x8x32xf32>
    tpu.vector_store %arg5[%c0_52, %c0_53, %c0_54], %150 {strides = array<i32>} : memref<1x8x32xf32, #tpu.memory_space<vmem>>, vector<1x8x32xf32>,
    return
  }
  func.func @transform_0(%arg0: i32) -> (i32, i32, i32) {
    %c0_i32 = arith.constant 0 : i32
    %c0_i32_0 = arith.constant 0 : i32
    %c0_i32_1 = arith.constant 0 : i32
    return %arg0, %c0_i32, %c0_i32_0 : i32, i32, i32
  }
  func.func @transform_1(%arg0: i32) -> (i32, i32) {
    %c0_i32 = arith.constant 0 : i32
    %c0_i32_0 = arith.constant 0 : i32
    %c0_i32_1 = arith.constant 0 : i32
    return %c0_i32, %c0_i32_0 : i32, i32
  }
  func.func @transform_2(%arg0: i32) -> (i32, i32) {
    %c0_i32 = arith.constant 0 : i32
    %c0_i32_0 = arith.constant 0 : i32
    %c0_i32_1 = arith.constant 0 : i32
    return %c0_i32, %c0_i32_0 : i32, i32
  }
  func.func @transform_3(%arg0: i32) -> (i32, i32) {
    %c0_i32 = arith.constant 0 : i32
    %c0_i32_0 = arith.constant 0 : i32
    %c0_i32_1 = arith.constant 0 : i32
    return %c0_i32, %c0_i32_0 : i32, i32
  }
  func.func @transform_4(%arg0: i32) -> (i32, i32, i32) {
    %c0_i32 = arith.constant 0 : i32
    %c0_i32_0 = arith.constant 0 : i32
    %c0_i32_1 = arith.constant 0 : i32
    return %arg0, %c0_i32, %c0_i32_0 : i32, i32, i32
  }
}

</mosaic_0001>

<llo_original>
// kernel: tpu_custom_call.1
$region0: #{tpu_custom_call.1}
  #allocation0 [shape = 'u32[]', space=smem, size = 0x4, offset = 0x4, fixed_abs, tag = 'smem constant byte address 0x4 - core index']
  #allocation1 [shape = 'u32[72,128]{1,0:T(1,128)}', space=vmem, size = 0x9000, scoped, tag = 'internal scratch']
  #allocation2 [shape = 'f32[8,32]{1,0:T(8,128)}', space=vmem, size = 0x1000, scoped, tag = 'scratch operand']
  %s0 = inlined_call_operand.hbm [shape: bf16[2,8,32], index: 0, kind: input, shape index: {}]
  %s1 = inlined_call_operand.hbm [shape: bf16[32,96], index: 1, kind: input, shape index: {}]
  %s2 = inlined_call_operand.hbm [shape: bf16[32,32], index: 2, kind: input, shape index: {}]
  %s3 = inlined_call_operand.vmem [shape: f32[1,32], index: 3, kind: input, shape index: {}]
  %s4 = inlined_call_operand.hbm [shape: f32[2,8,32], index: 4, kind: output, shape index: {}]
  %s5 = sld [smem:[#allocation0]]
  $region61: #{tpu_custom_call.1} parent=0
    _
  %s7 = ssub.s32 1, %s5
  %s8 = scalar_select 0, %s7, %s5
  $region1: #{tpu_custom_call.1} parent=0
    #allocation3 [shape = 'u8[4096]{0}', space=vmem, size = 0x1000, scoped, tag = 'input window, operand 0']
    #allocation4 [shape = 's32[2]{0}', space=sflag, size = 0x8, scoped, tag = 'scoped memory for tpu_custom_call.1']
    #allocation5 [shape = 's32[2]{0}', space=sflag, size = 0x8, scoped, tag = 'scoped memory for tpu_custom_call.1']
    #allocation6 [shape = 'u8[8192]{0}', space=vmem, size = 0x2000, scoped, tag = 'input window, operand 1, single buffered']
    #allocation7 [shape = 's32[1]{0}', space=sflag, size = 0x4, scoped, tag = 'scoped memory for tpu_custom_call.1']
    #allocation8 [shape = 'u8[8192]{0}', space=vmem, size = 0x2000, scoped, tag = 'input window, operand 2, single buffered']
    #allocation9 [shape = 'u8[8192]{0}', space=vmem, size = 0x2000, scoped, tag = 'output window, operand 0']
    %9 = vsyncpa [#allocation4], 0
    %s10 = scalar_lea.sflag [#allocation4], 1
    %11 = vsyncpa %s10, 0
    %12 = vsyncpa [#allocation7], 0
    %13 = vsyncpa [#allocation5], 0
    %s14 = scalar_lea.sflag [#allocation5], 1
    %15 = vsyncpa %s14, 0
    loop: start=0, step=1, limit=4
    $region2: #{tpu_custom_call.1} parent=1 // loop_pre_header
      _
    $region3: #{tpu_custom_call.1} parent=1 // loop_header
      %s17 = sphi 0, %s21
      %p18 = scmp.ge.s32.totalorder %s17, 4
      %s27 = sphi 0, %s29
      %s30 = sphi 0, %s27
      %s31 = sphi 0, %s30
      %s47 = sphi 0, %s31
      %s51 = sphi 0, %s51
      %s53 = sphi 0, %s51
      %s54 = sphi 0, %s53
      %s68 = sphi 0, %s54
      %s72 = sphi 0, %s72
      %s74 = sphi 0, %s72
      %s75 = sphi 0, %s74
      %s89 = sphi 0, %s75
      %s93 = sphi 0, %s93
      %s95 = sphi 0, %s93
      %s96 = sphi 0, %s95
      %s110 = sphi 0, %s96
      %s116 = sphi 0, %s118
      %s119 = sphi 0, %s116
      %s120 = sphi 0, %s119
      %s136 = sphi 0, %s120
    $region4: #{tpu_custom_call.1} parent=1 // loop_header_branch
      %20 = sbr.rel (%p18) target = $region8
    $region5: #{tpu_custom_call.1} parent=1 // loop_body
      %s22 = ssub.s32 %s17, 1
      %s23 = ssub.s32 %s17, 2
      %s24 = sadd.s32 %s17, 1
      %s25 = ssub.s32 %s17, %s24
      %p26 = scmp.eq.s32.totalorder %s25, 0
      %s28 = sadd.s32 %s27, 1
      %s29 = scalar_select %p26, %s27, %s28
      %p32 = pneg %p26
      %p33 = scmp.eq.s32.totalorder %s17, 1
      %p34 = por %p32, %p33
      %p35 = scmp.ne.s32.totalorder %s27, %s30
      %p36 = scmp.eq.s32.totalorder %s17, 0
      %p37 = por %p35, %p36
      %p38 = scmp.ne.s32.totalorder %s27, %s30
      %p39 = scmp.eq.s32.totalorder %s22, 1
      %p40 = por %p38, %p39
      %p41 = scmp.ne.s32.totalorder %s30, %s31
      %p42 = scmp.eq.s32.totalorder %s22, 0
      %p43 = por %p41, %p42
      %p44 = scmp.ne.s32.totalorder %s30, %s31
      %p45 = scmp.eq.s32.totalorder %s23, 1
      %p46 = por %p44, %p45
      %p48 = scmp.ne.s32.totalorder %s31, %s47
      %p49 = scmp.eq.s32.totalorder %s23, 0
      %p50 = por %p48, %p49
      %s52 = sadd.s32 %s51, 1
      %p55 = scmp.eq.s32.totalorder %s17, 1
      %p56 = scmp.ne.s32.totalorder %s51, %s53
      %p57 = scmp.eq.s32.totalorder %s17, 0
      %p58 = por %p56, %p57
      %p59 = scmp.ne.s32.totalorder %s51, %s53
      %p60 = scmp.eq.s32.totalorder %s22, 1
      %p61 = por %p59, %p60
      %p62 = scmp.ne.s32.totalorder %s53, %s54
      %p63 = scmp.eq.s32.totalorder %s22, 0
      %p64 = por %p62, %p63
      %p65 = scmp.ne.s32.totalorder %s53, %s54
      %p66 = scmp.eq.s32.totalorder %s23, 1
      %p67 = por %p65, %p66
      %p69 = scmp.ne.s32.totalorder %s54, %s68
      %p70 = scmp.eq.s32.totalorder %s23, 0
      %p71 = por %p69, %p70
      %s73 = sadd.s32 %s72, 1
      %p76 = scmp.eq.s32.totalorder %s17, 1
      %p77 = scmp.ne.s32.totalorder %s72, %s74
      %p78 = scmp.eq.s32.totalorder %s17, 0
      %p79 = por %p77, %p78
      %p80 = scmp.ne.s32.totalorder %s72, %s74
      %p81 = scmp.eq.s32.totalorder %s22, 1
      %p82 = por %p80, %p81
      %p83 = scmp.ne.s32.totalorder %s74, %s75
      %p84 = scmp.eq.s32.totalorder %s22, 0
      %p85 = por %p83, %p84
      %p86 = scmp.ne.s32.totalorder %s74, %s75
      %p87 = scmp.eq.s32.totalorder %s23, 1
      %p88 = por %p86, %p87
      %p90 = scmp.ne.s32.totalorder %s75, %s89
      %p91 = scmp.eq.s32.totalorder %s23, 0
      %p92 = por %p90, %p91
      %s94 = sadd.s32 %s93, 1
      %p97 = scmp.eq.s32.totalorder %s17, 1
      %p98 = scmp.ne.s32.totalorder %s93, %s95
      %p99 = scmp.eq.s32.totalorder %s17, 0
      %p100 = por %p98, %p99
      %p101 = scmp.ne.s32.totalorder %s93, %s95
      %p102 = scmp.eq.s32.totalorder %s22, 1
      %p103 = por %p101, %p102
      %p104 = scmp.ne.s32.totalorder %s95, %s96
      %p105 = scmp.eq.s32.totalorder %s22, 0
      %p106 = por %p104, %p105
      %p107 = scmp.ne.s32.totalorder %s95, %s96
      %p108 = scmp.eq.s32.totalorder %s23, 1
      %p109 = por %p107, %p108
      %p111 = scmp.ne.s32.totalorder %s96, %s110
      %p112 = scmp.eq.s32.totalorder %s23, 0
      %p113 = por %p111, %p112
      %s114 = ssub.s32 %s17, %s24
      %p115 = scmp.eq.s32.totalorder %s114, 0
      %s117 = sadd.s32 %s116, 1
      %s118 = scalar_select %p115, %s116, %s117
      %p121 = pneg %p115
      %p122 = scmp.eq.s32.totalorder %s17, 1
      %p123 = por %p121, %p122
      %p124 = scmp.ne.s32.totalorder %s116, %s119
      %p125 = scmp.eq.s32.totalorder %s17, 0
      %p126 = por %p124, %p125
      %p127 = scmp.ne.s32.totalorder %s116, %s119
      %p128 = scmp.eq.s32.totalorder %s22, 1
      %p129 = por %p127, %p128
      %p130 = scmp.ne.s32.totalorder %s119, %s120
      %p131 = scmp.eq.s32.totalorder %s22, 0
      %p132 = por %p130, %p131
      %p133 = scmp.ne.s32.totalorder %s119, %s120
      %p134 = scmp.eq.s32.totalorder %s23, 1
      %p135 = por %p133, %p134
      %p137 = scmp.ne.s32.totalorder %s120, %s136
      %p138 = scmp.eq.s32.totalorder %s23, 0
      %p139 = por %p137, %p138
      %p140 = scmp.le.s32.totalorder 1, %s17
      %p141 = scmp.lt.s32.totalorder %s17, 3
      %p142 = pnand %p140, %p141
      %p143 = pneg %p142
      // Predicated region
      $region9: #{tpu_custom_call.1} parent=5 // pred_check
        _
      $region10: #{tpu_custom_call.1} parent=5 // pred_check_branch
        %145 = sbr.rel (%p142) target = $region12
      $region11: #{tpu_custom_call.1} parent=5 // pred_region
        %s146 = ssub.s32 %s17, 1
        // Predicated region
        $region13: #{tpu_custom_call.1} parent=11 // pred_check
          %p147 = pneg %p64
        $region14: #{tpu_custom_call.1} parent=11 // pred_check_branch
          %149 = sbr.rel (%p147) target = $region16
        $region15: #{tpu_custom_call.1} parent=11 // pred_region
          %151 = vsyncadd [#allocation7], 0
          %s152 = sshll.u32 %s1, 4
          %s153 = int_to_ptr.hbm [resolvable:$true] %s152
          %s154 = sshll.u32 [#allocation6], 4
          %s155 = int_to_ptr.vmem [resolvable:$true] %s154
          %160 = dma.hbm_to_vmem [thread:$0]  %s153, 256, %s155, [#allocation7], 64, 64, 4
        $region16: #{tpu_custom_call.1} parent=11 // pred_fallthru
          _
        // Predicated region
        $region17: #{tpu_custom_call.1} parent=11 // pred_check
          %p161 = pneg %p85
        $region18: #{tpu_custom_call.1} parent=11 // pred_check_branch
          %163 = sbr.rel (%p161) target = $region20
        $region19: #{tpu_custom_call.1} parent=11 // pred_region
          %165 = vsyncadd [#allocation7], 0
          %s166 = sshll.u32 %s2, 4
          %s167 = int_to_ptr.hbm [resolvable:$true] %s166
          %s168 = sshll.u32 [#allocation8], 4
          %s169 = int_to_ptr.vmem [resolvable:$true] %s168
          %174 = dma.hbm_to_vmem [thread:$0]  %s167, 256, %s169, [#allocation7], 64, 64, 4
        $region20: #{tpu_custom_call.1} parent=11 // pred_fallthru
          _
        // Predicated region
        $region21: #{tpu_custom_call.1} parent=11 // pred_check
          %p175 = pneg %p106
        $region22: #{tpu_custom_call.1} parent=11 // pred_check_branch
          %177 = sbr.rel (%p175) target = $region24
        $region23: #{tpu_custom_call.1} parent=11 // pred_region
          _
        $region24: #{tpu_custom_call.1} parent=11 // pred_fallthru
          _
      $region12: #{tpu_custom_call.1} parent=5 // pred_fallthru
        _
      %p178 = scmp.lt.s32.totalorder %s17, 2
      // Predicated region
      $region25: #{tpu_custom_call.1} parent=5 // pred_check
        %p179 = pneg %p178
      $region26: #{tpu_custom_call.1} parent=5 // pred_check_branch
        %181 = sbr.rel (%p179) target = $region28
      $region27: #{tpu_custom_call.1} parent=5 // pred_region
        // Predicated region
        $region29: #{tpu_custom_call.1} parent=27 // pred_check
          %p182 = pneg %p37
        $region30: #{tpu_custom_call.1} parent=27 // pred_check_branch
          %184 = sbr.rel (%p182) target = $region32
        $region31: #{tpu_custom_call.1} parent=27 // pred_region
          %s185 = sand.u32 %s27, 1
          %s186 = scalar_lea.sflag [#allocation4], %s185
          %s187 = sand.u32 %s27, 1
          %s188 = smul.addr %s187, 4
          %s189 = scalar_lea.vmem [#allocation3], %s188
          %191 = vsyncadd %s186, 0
          %s192 = smul.addr %s17, 4
          %s193 = scalar_lea.hbm %s0, %s192
          %s195 = sshll.u32 %s193, 4
          %s196 = int_to_ptr.hbm [resolvable:$true] %s195
          %s197 = sshll.u32 %s189, 4
          %s198 = int_to_ptr.vmem [resolvable:$true] %s197
          %200 = dma.hbm_to_vmem [thread:$0]  %s196, 64, %s198, %s186
        $region32: #{tpu_custom_call.1} parent=27 // pred_fallthru
          _
      $region28: #{tpu_custom_call.1} parent=5 // pred_fallthru
        _
      %p201 = scmp.le.s32.totalorder 1, %s17
      %p202 = scmp.lt.s32.totalorder %s17, 3
      %p203 = pnand %p201, %p202
      %p204 = pneg %p203
      // Predicated region
      $region33: #{tpu_custom_call.1} parent=5 // pred_check
        _
      $region34: #{tpu_custom_call.1} parent=5 // pred_check_branch
        %206 = sbr.rel (%p203) target = $region36
      $region35: #{tpu_custom_call.1} parent=5 // pred_region
        %s207 = ssub.s32 %s17, 1
        %s208 = sand.u32 %s30, 1
        %s209 = scalar_lea.sflag [#allocation4], %s208
        %s210 = sand.u32 %s30, 1
        %s211 = smul.addr %s210, 4
        %s212 = scalar_lea.vmem [#allocation3], %s211
        // Predicated region
        $region37: #{tpu_custom_call.1} parent=35 // pred_check
          %p213 = pneg %p43
        $region38: #{tpu_custom_call.1} parent=35 // pred_check_branch
          %215 = sbr.rel (%p213) target = $region40
        $region39: #{tpu_custom_call.1} parent=35 // pred_region
          %217 = dma.done %s209, 64
        $region40: #{tpu_custom_call.1} parent=35 // pred_fallthru
          _
        // Predicated region
        $region41: #{tpu_custom_call.1} parent=35 // pred_check
          %p218 = pneg %p64
        $region42: #{tpu_custom_call.1} parent=35 // pred_check_branch
          %220 = sbr.rel (%p218) target = $region44
        $region43: #{tpu_custom_call.1} parent=35 // pred_region
          %222 = dma.done [#allocation7], 256
        $region44: #{tpu_custom_call.1} parent=35 // pred_fallthru
          _
        // Predicated region
        $region45: #{tpu_custom_call.1} parent=35 // pred_check
          %p223 = pneg %p85
        $region46: #{tpu_custom_call.1} parent=35 // pred_check_branch
          %225 = sbr.rel (%p223) target = $region48
        $region47: #{tpu_custom_call.1} parent=35 // pred_region
          %227 = dma.done [#allocation7], 256
        $region48: #{tpu_custom_call.1} parent=35 // pred_fallthru
          _
        %s228 = sand.u32 %s30, 1
        %s229 = scalar_lea.sflag [#allocation4], %s228
        %s230 = sand.u32 %s30, 1
        %s231 = smul.addr %s230, 4
        %s232 = scalar_lea.vmem [#allocation3], %s231
        %p233 = pneg %p43
        %p234 = pneg %p40
        %p235 = pneg %p64
        %p236 = pneg %p61
        %p237 = pneg %p85
        %p238 = pneg %p82
        %p239 = pneg %p106
        %p240 = pneg %p103
        %p241 = pneg %p132
        %p242 = pneg %p129
        %s243 = sand.u32 %s119, 1
        %s244 = scalar_lea.sflag [#allocation5], %s243
        %s245 = sand.u32 %s119, 1
        %s246 = smul.addr %s245, 8
        %s247 = scalar_lea.vmem [#allocation9], %s246
        %v249 = vld [vmem:[%s212] sm:$0xf]
        %v250 = vld [vmem:[#allocation6] sm:$0xf]
        %v251 = vld [vmem:[#allocation6 + $0x4] sm:$0xf]
        %v252 = vld [vmem:[#allocation6 + $0x8] sm:$0xf]
        %v253 = vld [vmem:[#allocation6 + $0xc] sm:$0xf]
        %v258 = vunpack.c.l.b16 %v250
        %v259 = vunpack.c.l.b16 %v251
        %v260 = vunpack.c.l.b16 %v252
        %v261 = vunpack.c.l.b16 %v253
        %v262 = vpack.c.b16 %v259, %v258
        %v263 = vpack.c.b16 %v261, %v260
        %vm266 = vcmask 261120
        %v268 = vsel %vm266, %v249, 0
        %270 = vmatpush.bf16.msra.mxu0 0
        %271 = vmatpush.bf16.msra.mxu0 0
        %272 = vmatpush.bf16.msra.mxu0 0
        %273 = vmatpush.bf16.msra.mxu0 0
        %274 = vmatpush.bf16.msra.mxu0 0
        %275 = vmatpush.bf16.msra.mxu0 0
        %276 = vmatpush.bf16.msra.mxu0 %v263
        %277 = vmatpush.bf16.msra.mxu0 %v262
        %278 = vmatmul.bf16.gmra.mxu0 %v268
        %v279 = vpop.f32.mrf.mxu0
        %v280 = vadd.f32 0.0, %v279
        %v281 = vpop.f32.mrf.mxu0
        %282 = vdwg.mxu0
        %v283 = vpack.c.bf16 %v280, %v280
        %v285 = vunpack.c.l.b16 %v283
        %v286 = vpack.c.b16 %v285, %v285
        %287 = vrot.lane.b32.xlu0 %v286, 96
        %v288 = vpop.permute.xlu0 %287
        %vm289 = vcmask 31744
        %v291 = vsel %vm289, %v283, 0
        %v294 = vsel %vm289, %v288, 0
        %296 = vmatpush.bf16.xpose.msra.mxu0 0
        %297 = vmatpush.bf16.xpose.msra.mxu0 0
        %298 = vmatpush.bf16.xpose.msra.mxu0 0
        %299 = vmatpush.bf16.xpose.msra.mxu0 0
        %300 = vmatpush.bf16.xpose.msra.mxu0 0
        %301 = vmatpush.bf16.xpose.msra.mxu0 0
        %302 = vmatpush.bf16.xpose.msra.mxu0 0
        %303 = vmatpush.bf16.xpose.msra.mxu0 %v294
        %304 = vmatmul.bf16.gmra.mxu0 %v291
        %v305 = vpop.f32.mrf.mxu0
        %v306 = vadd.f32 0.0, %v305
        %v307 = vpop.f32.mrf.mxu0
        %308 = vdwg.mxu0
        %vm309 = vcmask 64512
        %v310 = vsel %vm309, %v306, -inf
        %311 = vmax.xlane.f32.xlu0 %v310
        %v312 = vpop.xlane.xlu0 %311
        %v313 = vsub.f32 %v306, %v312
        %v314 = vmul.f32 %v313, 1.442695
        %v315 = vpow.pop %v314
        %v316 = vsel %vm309, %v315, 0.0
        %317 = vadd.xlane.f32.xlu0 %v316
        %v318 = vpop.xlane.xlu0 %317
        %v319 = vpack.c.bf16 %v315, %v315
        %320 = vrot.lane.b32.xlu0 %v286, 64
        %v321 = vpop.permute.xlu0 %320
        %v323 = vsel %vm309, %v319, 0
        %vm325 = vcmask 1043456
        %v327 = vsel %vm325, %v321, 0
        %329 = vmatpush.bf16.msra.mxu0 0
        %330 = vmatpush.bf16.msra.mxu0 0
        %331 = vmatpush.bf16.msra.mxu0 0
        %332 = vmatpush.bf16.msra.mxu0 0
        %333 = vmatpush.bf16.msra.mxu0 0
        %334 = vmatpush.bf16.msra.mxu0 0
        %335 = vmatpush.bf16.msra.mxu0 0
        %336 = vmatpush.bf16.msra.mxu0 %v327
        %337 = vmatmul.bf16.gmra.mxu0 %v323
        %v338 = vpop.f32.mrf.mxu0
        %v339 = vadd.f32 0.0, %v338
        %v340 = vpop.f32.mrf.mxu0
        %341 = vdwg.mxu0
        %v342 = vrcp.pop %v318
        %v343 = vmul.f32 %v339, %v342
        %344 = vst.msk [vmem:[#allocation2] sm:$0xff] %vm289, %v343
        %345 = vrot.lane.b32.xlu0 %v286, 124
        %v346 = vpop.permute.xlu0 %345
        %347 = vrot.lane.b32.xlu0 %v286, 92
        %v348 = vpop.permute.xlu0 %347
        %v350 = vsel %vm289, %v346, 0
        %v353 = vsel %vm289, %v348, 0
        %355 = vmatpush.bf16.xpose.msra.mxu0 0
        %356 = vmatpush.bf16.xpose.msra.mxu0 0
        %357 = vmatpush.bf16.xpose.msra.mxu0 0
        %358 = vmatpush.bf16.xpose.msra.mxu0 0
        %359 = vmatpush.bf16.xpose.msra.mxu0 0
        %360 = vmatpush.bf16.xpose.msra.mxu0 0
        %361 = vmatpush.bf16.xpose.msra.mxu0 0
        %362 = vmatpush.bf16.xpose.msra.mxu0 %v353
        %363 = vmatmul.bf16.gmra.mxu0 %v350
        %v364 = vpop.f32.mrf.mxu0
        %v365 = vadd.f32 0.0, %v364
        %v366 = vpop.f32.mrf.mxu0
        %367 = vdwg.mxu0
        %v368 = vsel %vm309, %v365, -inf
        %369 = vmax.xlane.f32.xlu0 %v368
        %v370 = vpop.xlane.xlu0 %369
        %v371 = vsub.f32 %v365, %v370
        %v372 = vmul.f32 %v371, 1.442695
        %v373 = vpow.pop %v372
        %v374 = vsel %vm309, %v373, 0.0
        %375 = vadd.xlane.f32.xlu0 %v374
        %v376 = vpop.xlane.xlu0 %375
        %v377 = vpack.c.bf16 %v373, %v373
        %378 = vrot.lane.b32.xlu0 %v286, 60
        %v379 = vpop.permute.xlu0 %378
        %v381 = vsel %vm309, %v377, 0
        %v384 = vsel %vm325, %v379, 0
        %386 = vmatpush.bf16.msra.mxu0 0
        %387 = vmatpush.bf16.msra.mxu0 0
        %388 = vmatpush.bf16.msra.mxu0 0
        %389 = vmatpush.bf16.msra.mxu0 0
        %390 = vmatpush.bf16.msra.mxu0 0
        %391 = vmatpush.bf16.msra.mxu0 0
        %392 = vmatpush.bf16.msra.mxu0 0
        %393 = vmatpush.bf16.msra.mxu0 %v384
        %394 = vmatmul.bf16.gmra.mxu0 %v381
        %v395 = vpop.f32.mrf.mxu0
        %v396 = vadd.f32 0.0, %v395
        %v397 = vpop.f32.mrf.mxu0
        %398 = vdwg.mxu0
        %v399 = vrcp.pop %v376
        %v400 = vmul.f32 %v396, %v399
        %402 = vrot.lane.b32.xlu0 %v400, 4
        %v403 = vpop.permute.xlu0 %402
        %vm405 = vcmask 64544
        %406 = vst.msk [vmem:[#allocation2] sm:$0xff] %vm405, %v403
        %407 = vrot.lane.b32.xlu0 %v286, 120
        %v408 = vpop.permute.xlu0 %407
        %409 = vrot.lane.b32.xlu0 %v286, 88
        %v410 = vpop.permute.xlu0 %409
        %v412 = vsel %vm289, %v408, 0
        %v415 = vsel %vm289, %v410, 0
        %417 = vmatpush.bf16.xpose.msra.mxu0 0
        %418 = vmatpush.bf16.xpose.msra.mxu0 0
        %419 = vmatpush.bf16.xpose.msra.mxu0 0
        %420 = vmatpush.bf16.xpose.msra.mxu0 0
        %421 = vmatpush.bf16.xpose.msra.mxu0 0
        %422 = vmatpush.bf16.xpose.msra.mxu0 0
        %423 = vmatpush.bf16.xpose.msra.mxu0 0
        %424 = vmatpush.bf16.xpose.msra.mxu0 %v415
        %425 = vmatmul.bf16.gmra.mxu0 %v412
        %v426 = vpop.f32.mrf.mxu0
        %v427 = vadd.f32 0.0, %v426
        %v428 = vpop.f32.mrf.mxu0
        %429 = vdwg.mxu0
        %v430 = vsel %vm309, %v427, -inf
        %431 = vmax.xlane.f32.xlu0 %v430
        %v432 = vpop.xlane.xlu0 %431
        %v433 = vsub.f32 %v427, %v432
        %v434 = vmul.f32 %v433, 1.442695
        %v435 = vpow.pop %v434
        %v436 = vsel %vm309, %v435, 0.0
        %437 = vadd.xlane.f32.xlu0 %v436
        %v438 = vpop.xlane.xlu0 %437
        %v439 = vpack.c.bf16 %v435, %v435
        %440 = vrot.lane.b32.xlu0 %v286, 56
        %v441 = vpop.permute.xlu0 %440
        %v443 = vsel %vm309, %v439, 0
        %v446 = vsel %vm325, %v441, 0
        %448 = vmatpush.bf16.msra.mxu0 0
        %449 = vmatpush.bf16.msra.mxu0 0
        %450 = vmatpush.bf16.msra.mxu0 0
        %451 = vmatpush.bf16.msra.mxu0 0
        %452 = vmatpush.bf16.msra.mxu0 0
        %453 = vmatpush.bf16.msra.mxu0 0
        %454 = vmatpush.bf16.msra.mxu0 0
        %455 = vmatpush.bf16.msra.mxu0 %v446
        %456 = vmatmul.bf16.gmra.mxu0 %v443
        %v457 = vpop.f32.mrf.mxu0
        %v458 = vadd.f32 0.0, %v457
        %v459 = vpop.f32.mrf.mxu0
        %460 = vdwg.mxu0
        %v461 = vrcp.pop %v438
        %v462 = vmul.f32 %v458, %v461
        %464 = vrot.lane.b32.xlu0 %v462, 8
        %v465 = vpop.permute.xlu0 %464
        %vm467 = vcmask 97344
        %468 = vst.msk [vmem:[#allocation2] sm:$0xff] %vm467, %v465
        %469 = vrot.lane.b32.xlu0 %v286, 116
        %v470 = vpop.permute.xlu0 %469
        %471 = vrot.lane.b32.xlu0 %v286, 84
        %v472 = vpop.permute.xlu0 %471
        %v474 = vsel %vm289, %v470, 0
        %v477 = vsel %vm289, %v472, 0
        %479 = vmatpush.bf16.xpose.msra.mxu0 0
        %480 = vmatpush.bf16.xpose.msra.mxu0 0
        %481 = vmatpush.bf16.xpose.msra.mxu0 0
        %482 = vmatpush.bf16.xpose.msra.mxu0 0
        %483 = vmatpush.bf16.xpose.msra.mxu0 0
        %484 = vmatpush.bf16.xpose.msra.mxu0 0
        %485 = vmatpush.bf16.xpose.msra.mxu0 0
        %486 = vmatpush.bf16.xpose.msra.mxu0 %v477
        %487 = vmatmul.bf16.gmra.mxu0 %v474
        %v488 = vpop.f32.mrf.mxu0
        %v489 = vadd.f32 0.0, %v488
        %v490 = vpop.f32.mrf.mxu0
        %491 = vdwg.mxu0
        %v492 = vsel %vm309, %v489, -inf
        %493 = vmax.xlane.f32.xlu0 %v492
        %v494 = vpop.xlane.xlu0 %493
        %v495 = vsub.f32 %v489, %v494
        %v496 = vmul.f32 %v495, 1.442695
        %v497 = vpow.pop %v496
        %v498 = vsel %vm309, %v497, 0.0
        %499 = vadd.xlane.f32.xlu0 %v498
        %v500 = vpop.xlane.xlu0 %499
        %v501 = vpack.c.bf16 %v497, %v497
        %502 = vrot.lane.b32.xlu0 %v286, 52
        %v503 = vpop.permute.xlu0 %502
        %v505 = vsel %vm309, %v501, 0
        %v508 = vsel %vm325, %v503, 0
        %510 = vmatpush.bf16.msra.mxu0 0
        %511 = vmatpush.bf16.msra.mxu0 0
        %512 = vmatpush.bf16.msra.mxu0 0
        %513 = vmatpush.bf16.msra.mxu0 0
        %514 = vmatpush.bf16.msra.mxu0 0
        %515 = vmatpush.bf16.msra.mxu0 0
        %516 = vmatpush.bf16.msra.mxu0 0
        %517 = vmatpush.bf16.msra.mxu0 %v508
        %518 = vmatmul.bf16.gmra.mxu0 %v505
        %v519 = vpop.f32.mrf.mxu0
        %v520 = vadd.f32 0.0, %v519
        %v521 = vpop.f32.mrf.mxu0
        %522 = vdwg.mxu0
        %v523 = vrcp.pop %v500
        %v524 = vmul.f32 %v520, %v523
        %526 = vrot.lane.b32.xlu0 %v524, 12
        %v527 = vpop.permute.xlu0 %526
        %vm529 = vcmask 130144
        %530 = vst.msk [vmem:[#allocation2] sm:$0xff] %vm529, %v527
        %531 = vrot.lane.b32.xlu0 %v286, 112
        %v532 = vpop.permute.xlu0 %531
        %533 = vrot.lane.b32.xlu0 %v286, 80
        %v534 = vpop.permute.xlu0 %533
        %v536 = vsel %vm289, %v532, 0
        %v539 = vsel %vm289, %v534, 0
        %541 = vmatpush.bf16.xpose.msra.mxu0 0
        %542 = vmatpush.bf16.xpose.msra.mxu0 0
        %543 = vmatpush.bf16.xpose.msra.mxu0 0
        %544 = vmatpush.bf16.xpose.msra.mxu0 0
        %545 = vmatpush.bf16.xpose.msra.mxu0 0
        %546 = vmatpush.bf16.xpose.msra.mxu0 0
        %547 = vmatpush.bf16.xpose.msra.mxu0 0
        %548 = vmatpush.bf16.xpose.msra.mxu0 %v539
        %549 = vmatmul.bf16.gmra.mxu0 %v536
        %v550 = vpop.f32.mrf.mxu0
        %v551 = vadd.f32 0.0, %v550
        %v552 = vpop.f32.mrf.mxu0
        %553 = vdwg.mxu0
        %v554 = vsel %vm309, %v551, -inf
        %555 = vmax.xlane.f32.xlu0 %v554
        %v556 = vpop.xlane.xlu0 %555
        %v557 = vsub.f32 %v551, %v556
        %v558 = vmul.f32 %v557, 1.442695
        %v559 = vpow.pop %v558
        %v560 = vsel %vm309, %v559, 0.0
        %561 = vadd.xlane.f32.xlu0 %v560
        %v562 = vpop.xlane.xlu0 %561
        %v563 = vpack.c.bf16 %v559, %v559
        %564 = vrot.lane.b32.xlu0 %v286, 48
        %v565 = vpop.permute.xlu0 %564
        %v567 = vsel %vm309, %v563, 0
        %v570 = vsel %vm325, %v565, 0
        %572 = vmatpush.bf16.msra.mxu0 0
        %573 = vmatpush.bf16.msra.mxu0 0
        %574 = vmatpush.bf16.msra.mxu0 0
        %575 = vmatpush.bf16.msra.mxu0 0
        %576 = vmatpush.bf16.msra.mxu0 0
        %577 = vmatpush.bf16.msra.mxu0 0
        %578 = vmatpush.bf16.msra.mxu0 0
        %579 = vmatpush.bf16.msra.mxu0 %v570
        %580 = vmatmul.bf16.gmra.mxu0 %v567
        %v581 = vpop.f32.mrf.mxu0
        %v582 = vadd.f32 0.0, %v581
        %v583 = vpop.f32.mrf.mxu0
        %584 = vdwg.mxu0
        %v585 = vrcp.pop %v562
        %v586 = vmul.f32 %v582, %v585
        %588 = vrot.lane.b32.xlu0 %v586, 16
        %v589 = vpop.permute.xlu0 %588
        %vm591 = vcmask 162944
        %592 = vst.msk [vmem:[#allocation2] sm:$0xff] %vm591, %v589
        %593 = vrot.lane.b32.xlu0 %v286, 108
        %v594 = vpop.permute.xlu0 %593
        %595 = vrot.lane.b32.xlu0 %v286, 76
        %v596 = vpop.permute.xlu0 %595
        %v598 = vsel %vm289, %v594, 0
        %v601 = vsel %vm289, %v596, 0
        %603 = vmatpush.bf16.xpose.msra.mxu0 0
        %604 = vmatpush.bf16.xpose.msra.mxu0 0
        %605 = vmatpush.bf16.xpose.msra.mxu0 0
        %606 = vmatpush.bf16.xpose.msra.mxu0 0
        %607 = vmatpush.bf16.xpose.msra.mxu0 0
        %608 = vmatpush.bf16.xpose.msra.mxu0 0
        %609 = vmatpush.bf16.xpose.msra.mxu0 0
        %610 = vmatpush.bf16.xpose.msra.mxu0 %v601
        %611 = vmatmul.bf16.gmra.mxu0 %v598
        %v612 = vpop.f32.mrf.mxu0
        %v613 = vadd.f32 0.0, %v612
        %v614 = vpop.f32.mrf.mxu0
        %615 = vdwg.mxu0
        %v616 = vsel %vm309, %v613, -inf
        %617 = vmax.xlane.f32.xlu0 %v616
        %v618 = vpop.xlane.xlu0 %617
        %v619 = vsub.f32 %v613, %v618
        %v620 = vmul.f32 %v619, 1.442695
        %v621 = vpow.pop %v620
        %v622 = vsel %vm309, %v621, 0.0
        %623 = vadd.xlane.f32.xlu0 %v622
        %v624 = vpop.xlane.xlu0 %623
        %v625 = vpack.c.bf16 %v621, %v621
        %626 = vrot.lane.b32.xlu0 %v286, 44
        %v627 = vpop.permute.xlu0 %626
        %v629 = vsel %vm309, %v625, 0
        %v632 = vsel %vm325, %v627, 0
        %634 = vmatpush.bf16.msra.mxu0 0
        %635 = vmatpush.bf16.msra.mxu0 0
        %636 = vmatpush.bf16.msra.mxu0 0
        %637 = vmatpush.bf16.msra.mxu0 0
        %638 = vmatpush.bf16.msra.mxu0 0
        %639 = vmatpush.bf16.msra.mxu0 0
        %640 = vmatpush.bf16.msra.mxu0 0
        %641 = vmatpush.bf16.msra.mxu0 %v632
        %642 = vmatmul.bf16.gmra.mxu0 %v629
        %v643 = vpop.f32.mrf.mxu0
        %v644 = vadd.f32 0.0, %v643
        %v645 = vpop.f32.mrf.mxu0
        %646 = vdwg.mxu0
        %v647 = vrcp.pop %v624
        %v648 = vmul.f32 %v644, %v647
        %650 = vrot.lane.b32.xlu0 %v648, 20
        %v651 = vpop.permute.xlu0 %650
        %vm653 = vcmask 195744
        %654 = vst.msk [vmem:[#allocation2] sm:$0xff] %vm653, %v651
        %655 = vrot.lane.b32.xlu0 %v286, 104
        %v656 = vpop.permute.xlu0 %655
        %657 = vrot.lane.b32.xlu0 %v286, 72
        %v658 = vpop.permute.xlu0 %657
        %v660 = vsel %vm289, %v656, 0
        %v663 = vsel %vm289, %v658, 0
        %665 = vmatpush.bf16.xpose.msra.mxu0 0
        %666 = vmatpush.bf16.xpose.msra.mxu0 0
        %667 = vmatpush.bf16.xpose.msra.mxu0 0
        %668 = vmatpush.bf16.xpose.msra.mxu0 0
        %669 = vmatpush.bf16.xpose.msra.mxu0 0
        %670 = vmatpush.bf16.xpose.msra.mxu0 0
        %671 = vmatpush.bf16.xpose.msra.mxu0 0
        %672 = vmatpush.bf16.xpose.msra.mxu0 %v663
        %673 = vmatmul.bf16.gmra.mxu0 %v660
        %v674 = vpop.f32.mrf.mxu0
        %v675 = vadd.f32 0.0, %v674
        %v676 = vpop.f32.mrf.mxu0
        %677 = vdwg.mxu0
        %v678 = vsel %vm309, %v675, -inf
        %679 = vmax.xlane.f32.xlu0 %v678
        %v680 = vpop.xlane.xlu0 %679
        %v681 = vsub.f32 %v675, %v680
        %v682 = vmul.f32 %v681, 1.442695
        %v683 = vpow.pop %v682
        %v684 = vsel %vm309, %v683, 0.0
        %685 = vadd.xlane.f32.xlu0 %v684
        %v686 = vpop.xlane.xlu0 %685
        %v687 = vpack.c.bf16 %v683, %v683
        %688 = vrot.lane.b32.xlu0 %v286, 40
        %v689 = vpop.permute.xlu0 %688
        %v691 = vsel %vm309, %v687, 0
        %v694 = vsel %vm325, %v689, 0
        %696 = vmatpush.bf16.msra.mxu0 0
        %697 = vmatpush.bf16.msra.mxu0 0
        %698 = vmatpush.bf16.msra.mxu0 0
        %699 = vmatpush.bf16.msra.mxu0 0
        %700 = vmatpush.bf16.msra.mxu0 0
        %701 = vmatpush.bf16.msra.mxu0 0
        %702 = vmatpush.bf16.msra.mxu0 0
        %703 = vmatpush.bf16.msra.mxu0 %v694
        %704 = vmatmul.bf16.gmra.mxu0 %v691
        %v705 = vpop.f32.mrf.mxu0
        %v706 = vadd.f32 0.0, %v705
        %v707 = vpop.f32.mrf.mxu0
        %708 = vdwg.mxu0
        %v709 = vrcp.pop %v686
        %v710 = vmul.f32 %v706, %v709
        %712 = vrot.lane.b32.xlu0 %v710, 24
        %v713 = vpop.permute.xlu0 %712
        %vm715 = vcmask 228544
        %716 = vst.msk [vmem:[#allocation2] sm:$0xff] %vm715, %v713
        %717 = vrot.lane.b32.xlu0 %v286, 100
        %v718 = vpop.permute.xlu0 %717
        %719 = vrot.lane.b32.xlu0 %v286, 68
        %v720 = vpop.permute.xlu0 %719
        %v722 = vsel %vm289, %v718, 0
        %v725 = vsel %vm289, %v720, 0
        %727 = vmatpush.bf16.xpose.msra.mxu0 0
        %728 = vmatpush.bf16.xpose.msra.mxu0 0
        %729 = vmatpush.bf16.xpose.msra.mxu0 0
        %730 = vmatpush.bf16.xpose.msra.mxu0 0
        %731 = vmatpush.bf16.xpose.msra.mxu0 0
        %732 = vmatpush.bf16.xpose.msra.mxu0 0
        %733 = vmatpush.bf16.xpose.msra.mxu0 0
        %734 = vmatpush.bf16.xpose.msra.mxu0 %v725
        %735 = vmatmul.bf16.gmra.mxu0 %v722
        %v736 = vpop.f32.mrf.mxu0
        %v737 = vadd.f32 0.0, %v736
        %v738 = vpop.f32.mrf.mxu0
        %739 = vdwg.mxu0
        %v740 = vsel %vm309, %v737, -inf
        %741 = vmax.xlane.f32.xlu0 %v740
        %v742 = vpop.xlane.xlu0 %741
        %v743 = vsub.f32 %v737, %v742
        %v744 = vmul.f32 %v743, 1.442695
        %v745 = vpow.pop %v744
        %v746 = vsel %vm309, %v745, 0.0
        %747 = vadd.xlane.f32.xlu0 %v746
        %v748 = vpop.xlane.xlu0 %747
        %v749 = vpack.c.bf16 %v745, %v745
        %750 = vrot.lane.b32.xlu0 %v286, 36
        %v751 = vpop.permute.xlu0 %750
        %v753 = vsel %vm309, %v749, 0
        %v756 = vsel %vm325, %v751, 0
        %758 = vmatpush.bf16.msra.mxu0 0
        %759 = vmatpush.bf16.msra.mxu0 0
        %760 = vmatpush.bf16.msra.mxu0 0
        %761 = vmatpush.bf16.msra.mxu0 0
        %762 = vmatpush.bf16.msra.mxu0 0
        %763 = vmatpush.bf16.msra.mxu0 0
        %764 = vmatpush.bf16.msra.mxu0 0
        %765 = vmatpush.bf16.msra.mxu0 %v756
        %766 = vmatmul.bf16.gmra.mxu0 %v753
        %v767 = vpop.f32.mrf.mxu0
        %v768 = vadd.f32 0.0, %v767
        %v769 = vpop.f32.mrf.mxu0
        %770 = vdwg.mxu0
        %v771 = vrcp.pop %v748
        %v772 = vmul.f32 %v768, %v771
        %774 = vrot.lane.b32.xlu0 %v772, 28
        %v775 = vpop.permute.xlu0 %774
        %vm777 = vcmask 261344
        %778 = vst.msk [vmem:[#allocation2] sm:$0xff] %vm777, %v775
        %v779 = vld [vmem:[#allocation2] sm:$0xff]
        %v780 = vpack.c.bf16 %v779, %v779
        %v781 = vld [vmem:[#allocation8] sm:$0xf]
        %v782 = vld [vmem:[#allocation8 + $0x4] sm:$0xf]
        %v783 = vld [vmem:[#allocation8 + $0x8] sm:$0xf]
        %v784 = vld [vmem:[#allocation8 + $0xc] sm:$0xf]
        %v785 = vld [vmem:[%s3] sm:$0x1]
        %v787 = vperm.slane %v785, 0
        %v793 = vunpack.c.l.b16 %v781
        %v794 = vunpack.c.l.b16 %v782
        %v795 = vunpack.c.l.b16 %v783
        %v796 = vunpack.c.l.b16 %v784
        %v797 = vpack.c.b16 %v794, %v793
        %v798 = vpack.c.b16 %v796, %v795
        %v802 = vsel %vm266, %v780, 0
        %804 = vmatpush.bf16.msra.mxu0 0
        %805 = vmatpush.bf16.msra.mxu0 0
        %806 = vmatpush.bf16.msra.mxu0 0
        %807 = vmatpush.bf16.msra.mxu0 0
        %808 = vmatpush.bf16.msra.mxu0 0
        %809 = vmatpush.bf16.msra.mxu0 0
        %810 = vmatpush.bf16.msra.mxu0 %v798
        %811 = vmatpush.bf16.msra.mxu0 %v797
        %812 = vmatmul.bf16.gmra.mxu0 %v802
        %v813 = vpop.f32.mrf.mxu0
        %v814 = vadd.f32 %v787, %v813
        %v815 = vpop.f32.mrf.mxu0
        %816 = vdwg.mxu0
        %817 = vst.msk [vmem:[%s247] sm:$0xff] %vm266, %v814
        %s818 = sand.u32 %s119, 1
        %s819 = scalar_lea.sflag [#allocation5], %s818
        %s820 = sand.u32 %s119, 1
        %s821 = smul.addr %s820, 8
        %s822 = scalar_lea.vmem [#allocation9], %s821
        // Predicated region
        $region49: #{tpu_custom_call.1} parent=35 // pred_check
          %p823 = pneg %p129
        $region50: #{tpu_custom_call.1} parent=35 // pred_check_branch
          %825 = sbr.rel (%p823) target = $region52
        $region51: #{tpu_custom_call.1} parent=35 // pred_region
          %827 = vsyncadd %s819, 0
          %s828 = smul.addr %s22, 8
          %s829 = scalar_lea.hbm %s4, %s828
          %s831 = sshll.u32 %s822, 4
          %s832 = int_to_ptr.vmem [resolvable:$true] %s831
          %s833 = sshll.u32 %s829, 4
          %s834 = int_to_ptr.hbm [resolvable:$true] %s833
          %836 = dma.vmem_to_hbm [thread:$0]  %s832, 128, %s834, %s819
        $region52: #{tpu_custom_call.1} parent=35 // pred_fallthru
          _
      $region36: #{tpu_custom_call.1} parent=5 // pred_fallthru
        _
      %p837 = scmp.le.s32.totalorder 2, %s17
      // Predicated region
      $region53: #{tpu_custom_call.1} parent=5 // pred_check
        %p838 = pneg %p837
      $region54: #{tpu_custom_call.1} parent=5 // pred_check_branch
        %840 = sbr.rel (%p838) target = $region56
      $region55: #{tpu_custom_call.1} parent=5 // pred_region
        %s841 = ssub.s32 %s17, 2
        // Predicated region
        $region57: #{tpu_custom_call.1} parent=55 // pred_check
          %p842 = pneg %p135
        $region58: #{tpu_custom_call.1} parent=55 // pred_check_branch
          %844 = sbr.rel (%p842) target = $region60
        $region59: #{tpu_custom_call.1} parent=55 // pred_region
          %s845 = sand.u32 %s120, 1
          %s846 = scalar_lea.sflag [#allocation5], %s845
          %s847 = sand.u32 %s120, 1
          %s848 = smul.addr %s847, 8
          %s849 = scalar_lea.vmem [#allocation9], %s848
          %851 = dma.done %s846, 128
        $region60: #{tpu_custom_call.1} parent=55 // pred_fallthru
          _
      $region56: #{tpu_custom_call.1} parent=5 // pred_fallthru
        _
    $region6: #{tpu_custom_call.1} parent=1 // loop_footer
      %s21 = sadd.s32 1, %s17
    $region7: #{tpu_custom_call.1} parent=1 // loop_footer_branch
      %16 = sbr.rel target = $region3
    $region8: #{tpu_custom_call.1} parent=1 // loop_exit
      _
    %852 = vsyncpa [#allocation4], 1
    %s853 = scalar_lea.sflag [#allocation4], 1
    %854 = vsyncpa %s853, 1
    %855 = vsyncpa [#allocation7], 1
    %856 = vsyncpa [#allocation5], 1
    %s857 = scalar_lea.sflag [#allocation5], 1
    %858 = vsyncpa %s857, 1

</llo_original>
